<compile_context>
chip_gen: v7x
topology: tpu7x:2x2x1
jax: 0.10.0
libtpu: 0.0.40
codegen_flags: <defaults>
</compile_context>

<pallas_src>
import jax
import jax.numpy as jnp
from jax.experimental import pallas as pl
from jax.experimental.pallas import tpu as pltpu

_LANES = 128
_TARGET_TILE_BYTES = 2 * 1024 * 1024  # ~2 MiB per tile


def _round_up(a: int, m: int) -> int:
    return ((a + m - 1) // m) * m


def _shifted_softplus_kernel(x_ref, o_ref):
    x = x_ref[...]
    xf = x.astype(jnp.float32)           # no-op for f32 inputs
    sx = xf - 1.0
    out = jnp.log1p(jnp.exp(-jnp.abs(sx))) + jnp.maximum(sx, 0.0)
    o_ref[...] = out.astype(o_ref.dtype)


def shifted_softplus(x: jax.Array) -> jax.Array:
    """Elementwise shifted softplus via a Pallas TPU kernel.

    Works for any input shape / float dtype; output matches input shape/dtype.
    """
    orig_shape = x.shape
    orig_dtype = x.dtype
    n = x.size

    itemsize = jnp.dtype(orig_dtype).itemsize
    sub = max(8, 32 // itemsize)          # 8 (f32), 16 (bf16/f16), 32 (int8/fp8)

    # Rows needed to hold all elements, rounded to the sublane alignment.
    rows = _round_up(pl.cdiv(n, _LANES), sub)
    padded = rows * _LANES

    x_flat = jnp.ravel(x)
    needs_pad = padded != n
    if needs_pad:
        x_flat = jnp.pad(x_flat, (0, padded - n))
    x2d = x_flat.reshape(rows, _LANES)    # reshape of contiguous data is free

    # Tile sizing: ~2 MiB per tile, aligned to `sub` rows, never bigger than
    # the whole slab, and capped so the grid keeps >= 4 steps when possible
    # (lets the "parallel" axis shard across v7x's two TensorCores).
    br = _TARGET_TILE_BYTES // (_LANES * itemsize)
    br = _round_up(max(sub, min(br, rows)), sub)
    quarter = (rows // 4) // sub * sub
    if quarter >= sub:
        br = min(br, quarter)

    grid = (pl.cdiv(rows, br),)           # ragged last block handled by Pallas

    out2d = pl.pallas_call(
        _shifted_softplus_kernel,
        out_shape=jax.ShapeDtypeStruct((rows, _LANES), orig_dtype),
        grid_spec=pltpu.PrefetchScalarGridSpec(
            num_scalar_prefetch=0,
            grid=grid,
            in_specs=[pl.BlockSpec((br, _LANES), lambda i: (i, 0))],
            out_specs=pl.BlockSpec((br, _LANES), lambda i: (i, 0)),
        ),
        compiler_params=pltpu.CompilerParams(
            dimension_semantics=("parallel",)
        ),
    )(x2d)

    if needs_pad:
        out_flat = out2d.reshape(-1)[:n]  # only pay the slice when we padded
    else:
        out_flat = out2d.reshape(-1)
    return out_flat.reshape(orig_shape)


def shifted_softplus_ref(x: jax.Array) -> jax.Array:
    sx = x.astype(jnp.float32) - 1.0
    out = jnp.log1p(jnp.exp(-jnp.abs(sx))) + jnp.maximum(sx, 0.0)
    return out.astype(x.dtype)


if __name__ == "__main__":
    key = jax.random.PRNGKey(0)

    # NCHW-style input consistent with the module's typical usage.
    x = jax.random.normal(key, (2, 4, 16, 16), dtype=jnp.float32) * 3.0
    out = jax.block_until_ready(shifted_softplus(x))
    ref = shifted_softplus_ref(x)
    assert out.shape == x.shape and out.dtype == x.dtype
    assert jnp.allclose(out, ref, atol=1e-6, rtol=1e-6), "mismatch vs reference (f32)"

    # Awkward (non-multiple-of-128) size to exercise the padded / ragged path.
    key2 = jax.random.PRNGKey(0)
    y = jax.random.normal(key2, (3, 5, 7), dtype=jnp.float32) * 2.0
    out_y = jax.block_until_ready(shifted_softplus(y))
    ref_y = shifted_softplus_ref(y)
    assert out_y.shape == y.shape and out_y.dtype == y.dtype
    assert jnp.allclose(out_y, ref_y, atol=1e-6, rtol=1e-6), "mismatch vs reference (ragged)"

    print("KERNEL_OK")
</pallas_src>

<mosaic_0001>
module attributes {stable_mosaic.version = 11 : i64} {
  func.func @_shifted_softplus_kernel(%arg0: i32, %arg1: memref<16x128xf32, #tpu.memory_space<vmem>>, %arg2: memref<16x128xf32, #tpu.memory_space<vmem>>) attributes {dimension_semantics = [#tpu.dimension_semantics<parallel>], iteration_bounds = array<i64: 1>, scalar_prefetch = 0 : i64, scratch_operands = 0 : i64, tpu.core_type = #tpu.core_type<tc>, window_params = [{transform_indices = @transform_0, window_bounds = array<i64: 16, 128>}, {transform_indices = @transform_1, window_bounds = array<i64: 16, 128>}]} {
    %c0 = arith.constant 0 : index
    %c0_0 = arith.constant 0 : index
    %0 = vector.load %arg1[%c0, %c0_0] : memref<16x128xf32, #tpu.memory_space<vmem>>, vector<16x128xf32>
    %cst = arith.constant 1.000000e+00 : f32
    %1 = vector.broadcast %cst : f32 to vector<16x128xf32>
    %2 = arith.subf %0, %1 : vector<16x128xf32>
    %3 = math.absf %2 : vector<16x128xf32>
    %cst_1 = arith.constant 0.000000e+00 : f32
    %4 = vector.broadcast %cst_1 : f32 to vector<16x128xf32>
    %5 = arith.subf %4, %3 : vector<16x128xf32>
    %6 = math.exp %5 : vector<16x128xf32>
    %7 = math.log1p %6 : vector<16x128xf32>
    %cst_2 = arith.constant 0.000000e+00 : f32
    %8 = vector.broadcast %cst_2 : f32 to vector<16x128xf32>
    %9 = arith.maximumf %2, %8 : vector<16x128xf32>
    %10 = arith.addf %7, %9 : vector<16x128xf32>
    %c0_3 = arith.constant 0 : index
    %c0_4 = arith.constant 0 : index
    %11 = vector.load %arg2[%c0_3, %c0_4] : memref<16x128xf32, #tpu.memory_space<vmem>>, vector<16x128xf32>
    tpu.vector_store %arg2[%c0_3, %c0_4], %10 {strides = array<i32>} : memref<16x128xf32, #tpu.memory_space<vmem>>, vector<16x128xf32>,
    return
  }
  func.func @transform_0(%arg0: i32) -> (i32, i32) {
    %c0_i32 = arith.constant 0 : i32
    %c0_i32_0 = arith.constant 0 : i32
    return %arg0, %c0_i32 : i32, i32
  }
  func.func @transform_1(%arg0: i32) -> (i32, i32) {
    %c0_i32 = arith.constant 0 : i32
    %c0_i32_0 = arith.constant 0 : i32
    return %arg0, %c0_i32 : i32, i32
  }
}

</mosaic_0001>

<llo_original>
// kernel: tpu_custom_call.1
$region0: #{tpu_custom_call.1}
  #allocation0 [shape = 'u32[]', space=smem, size = 0x4, offset = 0x4, fixed_abs, tag = 'smem constant byte address 0x4 - core index']
  #allocation1 [shape = 'u32[144,128]{1,0:T(1,128)}', space=vmem, size = 0x12000, scoped, tag = 'internal scratch']
  %s0 = inlined_call_operand.hbm [shape: f32[16,128], index: 0, kind: input, shape index: {}]
  %s1 = inlined_call_operand.hbm [shape: f32[16,128], index: 1, kind: output, shape index: {}]
  %s2 = sld [smem:[#allocation0]]
  $region18: #{tpu_custom_call.1} parent=0
    _
  %s4 = ssub.s32 1, %s2
  %s5 = scalar_select 0, %s4, %s2
  $region1: #{tpu_custom_call.1} parent=0
    #allocation2 [shape = 'u8[8192]{0}', space=vmem, size = 0x2000, scoped, tag = 'input window, operand 0, single buffered']
    #allocation3 [shape = 's32[1]{0}', space=sflag, size = 0x4, scoped, tag = 'scoped memory for tpu_custom_call.1']
    #allocation4 [shape = 's32[1]{0}', space=sflag, size = 0x4, scoped, tag = 'scoped memory for tpu_custom_call.1']
    #allocation5 [shape = 'u8[8192]{0}', space=vmem, size = 0x2000, scoped, tag = 'output window, operand 0, single buffered']
    %6 = vsyncpa [#allocation3], 0
    %7 = vsyncpa [#allocation4], 0
    // Predicated region
    $region2: #{tpu_custom_call.1} parent=1 // pred_check
      _
    $region3: #{tpu_custom_call.1} parent=1 // pred_check_branch
      %9 = sbr.rel (0) target = $region5
    $region4: #{tpu_custom_call.1} parent=1 // pred_region
      %s11 = ssub.s32 256, 256
      %12 = vsyncadd [#allocation3], %s11
      %s13 = sshll.u32 [#allocation2], 4
      %s14 = int_to_ptr.vmem [resolvable:$true] %s13
      %19 = dma.hbm_to_vmem [thread:$0]  %s0, 256, %s14, [#allocation3], 128, 128, 8
    $region5: #{tpu_custom_call.1} parent=1 // pred_fallthru
      _
    // Predicated region
    $region6: #{tpu_custom_call.1} parent=1 // pred_check
      _
    $region7: #{tpu_custom_call.1} parent=1 // pred_check_branch
      %21 = sbr.rel (0) target = $region9
    $region8: #{tpu_custom_call.1} parent=1 // pred_region
      %22 = dma.done [#allocation3], 256
    $region9: #{tpu_custom_call.1} parent=1 // pred_fallthru
      _
    %v23 = vld [vmem:[#allocation2] sm:$0xff]
    %v24 = vld [vmem:[#allocation2 + $0x8] sm:$0xff]
    %v25 = vsub.f32 %v23, 1.0
    %v26 = vsub.f32 %v24, 1.0
    %v27 = vand.u32 2147483647, %v25
    %v28 = vand.u32 2147483647, %v26
    %v29 = vsub.f32 0.0, %v27
    %v30 = vsub.f32 0.0, %v28
    %v31 = vmul.f32 %v29, 1.442695
    %v32 = vpow.pop %v31
    %v33 = vmul.f32 %v30, 1.442695
    %v34 = vpow.pop %v33
    %v35 = vadd.f32 %v32, 1.0
    %v36 = vlog2.pop %v35
    %v37 = vmul.f32 %v36, 0.6931472
    %v38 = vmul.f32 -0.5, %v32
    %v39 = vadd.f32 %v38, 1.0
    %v40 = vmul.f32 %v39, %v32
    %v41 = vand.u32 2147483647, %v32
    %vm42 = vcmp.lt.f32.partialorder %v41, 0.0004427343
    %v43 = vsel %vm42, %v40, %v37
    %v44 = vadd.f32 %v34, 1.0
    %v45 = vlog2.pop %v44
    %v46 = vmul.f32 %v45, 0.6931472
    %v47 = vmul.f32 -0.5, %v34
    %v48 = vadd.f32 %v47, 1.0
    %v49 = vmul.f32 %v48, %v34
    %v50 = vand.u32 2147483647, %v34
    %vm51 = vcmp.lt.f32.partialorder %v50, 0.0004427343
    %v52 = vsel %vm51, %v49, %v46
    %v53 = vmax.f32 %v25, 0.0
    %v54 = vmax.f32 %v26, 0.0
    %v55 = vadd.f32 %v43, %v53
    %v56 = vadd.f32 %v52, %v54
    %57 = vst [vmem:[#allocation5] sm:$0xff] %v55
    %58 = vst [vmem:[#allocation5 + $0x8] sm:$0xff] %v56
    // Predicated region
    $region10: #{tpu_custom_call.1} parent=1 // pred_check
      _
    $region11: #{tpu_custom_call.1} parent=1 // pred_check_branch
      %60 = sbr.rel (0) target = $region13
    $region12: #{tpu_custom_call.1} parent=1 // pred_region
      %s62 = ssub.s32 256, 256
      %63 = vsyncadd [#allocation4], %s62
      %s64 = sshll.u32 [#allocation5], 4
      %s65 = int_to_ptr.vmem [resolvable:$true] %s64
      %70 = dma.vmem_to_hbm [thread:$0]  %s65, 256, %s1, [#allocation4], 128, 128, 8
    $region13: #{tpu_custom_call.1} parent=1 // pred_fallthru
      _
    // Predicated region
    $region14: #{tpu_custom_call.1} parent=1 // pred_check
      _
    $region15: #{tpu_custom_call.1} parent=1 // pred_check_branch
      %72 = sbr.rel (0) target = $region17
    $region16: #{tpu_custom_call.1} parent=1 // pred_region
      %73 = dma.done [#allocation4], 256
    $region17: #{tpu_custom_call.1} parent=1 // pred_fallthru
      _
    %74 = vsyncpa [#allocation3], 1
    %75 = vsyncpa [#allocation4], 1

</llo_original>
